<compile_context>
chip_gen: v5e
topology: v5e:2x2
jax: 0.10.0
libtpu: 0.0.40
codegen_flags: <defaults>
</compile_context>

<pallas_src>
import functools

import jax
import jax.numpy as jnp
from jax.experimental import pallas as pl
from jax.experimental.pallas import tpu as pltpu

_NEG_INF = -1e30   # finite "minus infinity" for padded action columns
_LANE = 128        # TPU lane width


def _round_up(v, m):
    return ((v + m - 1) // m) * m


def _decoder_kernel(x_ref, w1_ref, b1_ref, w2_ref, b2_ref, out_ref, *,
                    n_actions, cast_bf16):
    x = x_ref[...]
    w1 = w1_ref[...]
    if cast_bf16:
        x = x.astype(jnp.bfloat16)          # w1 already bf16 from the wrapper
    # Linear(H, H) + Tanh  (MXU matmul, tanh on the EUP; f32 accumulation)
    h = jnp.tanh(
        jnp.dot(x, w1, preferred_element_type=jnp.float32) + b1_ref[...]
    )
    w2 = w2_ref[...]
    if cast_bf16:
        h = h.astype(jnp.bfloat16)
    # Linear(H, N_pad): padded columns carry a -1e30 bias -> exp() == 0 below,
    # so the normalization over the full 128-lane tile equals the unpadded one.
    logits = jnp.dot(h, w2, preferred_element_type=jnp.float32) + b2_ref[...]
    # Numerically stable log_softmax along the lane-dense last axis.
    m = jnp.max(logits, axis=-1, keepdims=True)
    shifted = logits - m
    lse = jnp.log(jnp.sum(jnp.exp(shifted), axis=-1, keepdims=True))
    logp = shifted - lse
    # Store only the valid N columns (masked vst) -> (tb, N) HBM writeback,
    # no post-kernel slice pass needed.
    out_ref[...] = logp[:, :n_actions].astype(out_ref.dtype)


def _select_batch_tile(B, batch_tile):
    # Sublane-aligned tile; ensure the grid has >= 2 steps so the ("parallel",)
    # batch axis can shard across both v7x TensorCores, capped at batch_tile
    # (2048 keeps double-buffered tiles inside every generation's scoped VMEM).
    tb = min(batch_tile, _round_up(pl.cdiv(B, 2), 8))
    return max(tb, 8)


def impossibly_good_actor_decoder(x, w1, b1, w2, b2, *,
                                  batch_tile=2048,
                                  gridless_threshold=256,
                                  use_bf16=False):
    """x: (B, H) f32 -> (B, N) log-probabilities (the Categorical's logits)."""
    B, H = x.shape
    N = w2.shape[1]
    b1 = b1.reshape(1, H).astype(jnp.float32)
    b2 = b2.reshape(1, N).astype(jnp.float32)

    # Lane-dense compute: pad the action dim up to a multiple of 128 in VMEM.
    n_pad = _round_up(max(N, _LANE), _LANE)
    if n_pad != N:
        w2p = jnp.zeros((H, n_pad), w2.dtype).at[:, :N].set(w2)
        b2p = jnp.full((1, n_pad), _NEG_INF, jnp.float32).at[:, :N].set(b2)
    else:
        w2p, b2p = w2, b2

    if use_bf16:
        # Cast weights once here; x / h are cast in-kernel. Biases stay f32.
        w1 = w1.astype(jnp.bfloat16)
        w2p = w2p.astype(jnp.bfloat16)

    kernel = functools.partial(_decoder_kernel, n_actions=N, cast_bf16=use_bf16)
    wbytes = 2 if use_bf16 else 4

    if B <= gridless_threshold:
        # Gridless call: no pipeline prologue/epilogue, no double-buffering.
        # This path is launch + weight-DMA bound; give XLA a cost hint.
        vmem = pl.BlockSpec(memory_space=pltpu.MemorySpace.VMEM)
        cost = pl.CostEstimate(
            flops=2 * B * H * H + 2 * B * H * n_pad,
            transcendentals=B * (H + n_pad),
            bytes_accessed=(B * H * 4 + H * H * wbytes + H * n_pad * wbytes
                            + (H + n_pad) * 4 + B * N * 4),
        )
        return pl.pallas_call(
            kernel,
            out_shape=jax.ShapeDtypeStruct((B, N), jnp.float32),
            in_specs=[vmem, vmem, vmem, vmem, vmem],
            out_specs=vmem,
            cost_estimate=cost,
        )(x, w1, b1, w2p, b2p)

    # ---- Batch-tiled path for rollout batches (no zero-pad of x). ----
    tb = _select_batch_tile(B, batch_tile)
    grid = (pl.cdiv(B, tb),)
    return pl.pallas_call(
        kernel,
        out_shape=jax.ShapeDtypeStruct((B, N), jnp.float32),
        grid=grid,
        in_specs=[
            pl.BlockSpec((tb, H), lambda i: (i, 0)),
            pl.BlockSpec((H, H), lambda i: (0, 0)),        # weights pinned in VMEM
            pl.BlockSpec((1, H), lambda i: (0, 0)),
            pl.BlockSpec((H, n_pad), lambda i: (0, 0)),
            pl.BlockSpec((1, n_pad), lambda i: (0, 0)),
        ],
        out_specs=pl.BlockSpec((tb, N), lambda i: (i, 0)),  # last dim = full array
        compiler_params=pltpu.CompilerParams(
            dimension_semantics=("parallel",),              # megacore on v7x
        ),
    )(x, w1, b1, w2p, b2p)


def _reference(x, w1, b1, w2, b2):
    h = jnp.tanh(x @ w1 + b1.reshape(1, -1))
    logits = h @ w2 + b2.reshape(1, -1)
    return jax.nn.log_softmax(logits, axis=-1)


if __name__ == "__main__":
    # Module-consistent shapes: hidden_channels=256, num_actions=7, batch=8.
    B, H, N = 8, 256, 7

    key = jax.random.PRNGKey(0)
    kx, k1, k2, k3, k4 = jax.random.split(key, 5)

    x = jax.random.normal(kx, (B, H), dtype=jnp.float32)
    bound = 1.0 / (H ** 0.5)
    w1 = jax.random.uniform(k1, (H, H), minval=-bound, maxval=bound, dtype=jnp.float32)
    b1 = jax.random.uniform(k2, (1, H), minval=-bound, maxval=bound, dtype=jnp.float32)
    w2 = jax.random.uniform(k3, (H, N), minval=-bound, maxval=bound, dtype=jnp.float32)
    b2 = jax.random.uniform(k4, (1, N), minval=-bound, maxval=bound, dtype=jnp.float32)

    # 1) Tiny-batch inference path (gridless, full-VMEM blocks, cost estimate).
    out = jax.block_until_ready(impossibly_good_actor_decoder(x, w1, b1, w2, b2))
    ref = _reference(x, w1, b1, w2, b2)
    assert out.shape == (B, N)
    assert jnp.allclose(out, ref, atol=1e-5, rtol=1e-5), "mismatch vs reference (small B)"
    assert jnp.allclose(jnp.exp(out).sum(-1), 1.0, atol=1e-5)

    # 2) Batch-tiled rollout path: B=300 is not a multiple of the tile, which
    #    exercises partial-block clipping (no wrapper zero-pad) and the 2-step
    #    "parallel" grid (both TensorCores busy on v7x).
    B2 = 300
    x2 = jax.random.normal(jax.random.PRNGKey(1), (B2, H), dtype=jnp.float32)
    out2 = jax.block_until_ready(impossibly_good_actor_decoder(x2, w1, b1, w2, b2))
    ref2 = _reference(x2, w1, b1, w2, b2)
    assert out2.shape == (B2, N)
    assert jnp.allclose(out2, ref2, atol=1e-4, rtol=1e-4), "mismatch vs reference (tiled B)"
    assert jnp.allclose(jnp.exp(out2).sum(-1), 1.0, atol=1e-4)

    # 3) Opt-in bf16 matmul mode (looser tolerance by design).
    out3 = jax.block_until_ready(
        impossibly_good_actor_decoder(x2, w1, b1, w2, b2, use_bf16=True))
    assert out3.shape == (B2, N)
    assert jnp.allclose(out3, ref2, atol=5e-2, rtol=5e-2), "mismatch vs reference (bf16)"
    assert jnp.allclose(jnp.exp(out3).sum(-1), 1.0, atol=1e-3)

    print("KERNEL_OK")
</pallas_src>

<mosaic_0001>
module attributes {stable_mosaic.version = 11 : i64} {
  func.func @_decoder_kernel(%arg0: memref<8x256xf32, #tpu.memory_space<vmem>>, %arg1: memref<256x256xf32, #tpu.memory_space<vmem>>, %arg2: memref<1x256xf32, #tpu.memory_space<vmem>>, %arg3: memref<256x128xf32, #tpu.memory_space<vmem>>, %arg4: memref<1x128xf32, #tpu.memory_space<vmem>>, %arg5: memref<8x7xf32, #tpu.memory_space<vmem>>) attributes {dimension_semantics = [], scalar_prefetch = 0 : i64, scratch_operands = 0 : i64, tpu.core_type = #tpu.core_type<tc>} {
    %c0 = arith.constant 0 : index
    %c0_0 = arith.constant 0 : index
    %0 = vector.load %arg0[%c0, %c0_0] : memref<8x256xf32, #tpu.memory_space<vmem>>, vector<8x256xf32>
    %c0_1 = arith.constant 0 : index
    %c0_2 = arith.constant 0 : index
    %1 = vector.load %arg1[%c0_1, %c0_2] : memref<256x256xf32, #tpu.memory_space<vmem>>, vector<256x256xf32>
    %cst = arith.constant dense<0.000000e+00> : vector<8x256xf32>
    %2 = tpu.matmul %0, %1, %cst {dimension_numbers = #tpu.dot_dimension_numbers<[1], [0], [0], [1], [0, 0, 1, 1], [], []>} : vector<8x256xf32>, vector<256x256xf32>, vector<8x256xf32> -> vector<8x256xf32>
    %c0_3 = arith.constant 0 : index
    %c0_4 = arith.constant 0 : index
    %3 = vector.load %arg2[%c0_3, %c0_4] : memref<1x256xf32, #tpu.memory_space<vmem>>, vector<1x256xf32>
    %4 = vector.broadcast %3 : vector<1x256xf32> to vector<8x256xf32>
    %5 = arith.addf %2, %4 : vector<8x256xf32>
    %6 = math.tanh %5 : vector<8x256xf32>
    %c0_5 = arith.constant 0 : index
    %c0_6 = arith.constant 0 : index
    %7 = vector.load %arg3[%c0_5, %c0_6] : memref<256x128xf32, #tpu.memory_space<vmem>>, vector<256x128xf32>
    %cst_7 = arith.constant dense<0.000000e+00> : vector<8x128xf32>
    %8 = tpu.matmul %6, %7, %cst_7 {dimension_numbers = #tpu.dot_dimension_numbers<[1], [0], [0], [1], [0, 0, 1, 1], [], []>} : vector<8x256xf32>, vector<256x128xf32>, vector<8x128xf32> -> vector<8x128xf32>
    %c0_8 = arith.constant 0 : index
    %c0_9 = arith.constant 0 : index
    %9 = vector.load %arg4[%c0_8, %c0_9] : memref<1x128xf32, #tpu.memory_space<vmem>>, vector<1x128xf32>
    %10 = vector.broadcast %9 : vector<1x128xf32> to vector<8x128xf32>
    %11 = arith.addf %8, %10 : vector<8x128xf32>
    %cst_10 = arith.constant dense<0xFF800000> : vector<8xf32>
    %12 = vector.multi_reduction <maximumf>, %11, %cst_10 [1] : vector<8x128xf32> to vector<8xf32>
    %13 = vector.shape_cast %12 : vector<8xf32> to vector<8x1xf32>
    %14 = vector.broadcast %13 : vector<8x1xf32> to vector<8x128xf32>
    %15 = arith.subf %11, %14 : vector<8x128xf32>
    %16 = math.exp %15 : vector<8x128xf32>
    %cst_11 = arith.constant dense<0.000000e+00> : vector<8xf32>
    %17 = vector.multi_reduction <add>, %16, %cst_11 [1] : vector<8x128xf32> to vector<8xf32>
    %18 = vector.shape_cast %17 : vector<8xf32> to vector<8x1xf32>
    %19 = math.log %18 : vector<8x1xf32>
    %20 = vector.broadcast %19 : vector<8x1xf32> to vector<8x128xf32>
    %21 = arith.subf %15, %20 : vector<8x128xf32>
    %22 = vector.extract_strided_slice %21 {offsets = [0, 0], sizes = [8, 7], strides = [1, 1]} : vector<8x128xf32> to vector<8x7xf32>
    %c0_12 = arith.constant 0 : index
    %c0_13 = arith.constant 0 : index
    %23 = vector.load %arg5[%c0_12, %c0_13] : memref<8x7xf32, #tpu.memory_space<vmem>>, vector<8x7xf32>
    tpu.vector_store %arg5[%c0_12, %c0_13], %22 {strides = array<i32>} : memref<8x7xf32, #tpu.memory_space<vmem>>, vector<8x7xf32>,
    return
  }
}

</mosaic_0001>

<llo_original>
// kernel: tpu_custom_call.1
$region0: #{tpu_custom_call.1}
  #allocation0 [shape = 'u32[]', space=smem, size = 0x4, offset = 0x4, fixed_abs, tag = 'smem constant byte address 0x4 - core index']
  #allocation1 [shape = 'u32[72,128]{1,0:T(1,128)}', space=vmem, size = 0x9000, scoped, tag = 'internal scratch']
  %s0 = inlined_call_operand.hbm [shape: f32[8,256], index: 0, kind: input, shape index: {}]
  %s1 = inlined_call_operand.hbm [shape: f32[256,256], index: 1, kind: input, shape index: {}]
  %s2 = inlined_call_operand.hbm [shape: f32[1,256], index: 2, kind: input, shape index: {}]
  %s3 = inlined_call_operand.hbm [shape: f32[256,128], index: 3, kind: input, shape index: {}]
  %s4 = inlined_call_operand.vmem [shape: f32[1,128], index: 4, kind: input, shape index: {}]
  %s5 = inlined_call_operand.hbm [shape: f32[8,7], index: 5, kind: output, shape index: {}]
  %s6 = sld [smem:[#allocation0]]
  $region46: #{tpu_custom_call.1} parent=0
    _
  %s8 = ssub.s32 1, %s6
  %s9 = scalar_select 0, %s8, %s6
  $region1: #{tpu_custom_call.1} parent=0
    #allocation2 [shape = 'u8[8192]{0}', space=vmem, size = 0x2000, scoped, tag = 'input window, operand 0, single buffered']
    #allocation3 [shape = 's32[1]{0}', space=sflag, size = 0x4, scoped, tag = 'scoped memory for tpu_custom_call.1']
    #allocation4 [shape = 's32[1]{0}', space=sflag, size = 0x4, scoped, tag = 'scoped memory for tpu_custom_call.1']
    #allocation5 [shape = 'u8[262144]{0}', space=vmem, size = 0x40000, scoped, tag = 'input window, operand 1, single buffered']
    #allocation6 [shape = 's32[1]{0}', space=sflag, size = 0x4, scoped, tag = 'scoped memory for tpu_custom_call.1']
    #allocation7 [shape = 'u8[1024]{0}', space=vmem, size = 0x400, scoped, tag = 'input window, operand 2, single buffered']
    #allocation8 [shape = 'u8[131072]{0}', space=vmem, size = 0x20000, scoped, tag = 'input window, operand 3, single buffered']
    #allocation9 [shape = 's32[1]{0}', space=sflag, size = 0x4, scoped, tag = 'scoped memory for tpu_custom_call.1']
    #allocation10 [shape = 'u8[4096]{0}', space=vmem, size = 0x1000, scoped, tag = 'output window, operand 0, single buffered']
    %10 = vsyncpa [#allocation3], 0
    %11 = vsyncpa [#allocation6], 0
    %12 = vsyncpa [#allocation9], 0
    %13 = vsyncpa [#allocation4], 0
    // Predicated region
    $region2: #{tpu_custom_call.1} parent=1 // pred_check
      _
    $region3: #{tpu_custom_call.1} parent=1 // pred_check_branch
      %15 = sbr.rel (0) target = $region5
    $region4: #{tpu_custom_call.1} parent=1 // pred_region
      %17 = vsyncadd [#allocation3], 0
      %s19 = sshll.u32 %s0, 4
      %s20 = int_to_ptr.hbm [resolvable:$true] %s19
      %s21 = sshll.u32 [#allocation2], 4
      %s22 = int_to_ptr.vmem [resolvable:$true] %s21
      %24 = dma.hbm_to_vmem [thread:$0]  %s20, 256, %s22, [#allocation3]
    $region5: #{tpu_custom_call.1} parent=1 // pred_fallthru
      _
    // Predicated region
    $region6: #{tpu_custom_call.1} parent=1 // pred_check
      _
    $region7: #{tpu_custom_call.1} parent=1 // pred_check_branch
      %26 = sbr.rel (0) target = $region9
    $region8: #{tpu_custom_call.1} parent=1 // pred_region
      %28 = vsyncadd [#allocation6], 0
      %s29 = sshll.u32 %s1, 4
      %s30 = int_to_ptr.hbm [resolvable:$true] %s29
      %s31 = sshll.u32 [#allocation5], 4
      %s32 = int_to_ptr.vmem [resolvable:$true] %s31
      %37 = dma.hbm_to_vmem [thread:$0]  %s30, 8192, %s32, [#allocation6], 256, 256, 16
    $region9: #{tpu_custom_call.1} parent=1 // pred_fallthru
      _
    // Predicated region
    $region10: #{tpu_custom_call.1} parent=1 // pred_check
      _
    $region11: #{tpu_custom_call.1} parent=1 // pred_check_branch
      %39 = sbr.rel (0) target = $region13
    $region12: #{tpu_custom_call.1} parent=1 // pred_region
      %41 = vsyncadd [#allocation6], 0
      %s43 = sshll.u32 %s2, 4
      %s44 = int_to_ptr.hbm [resolvable:$true] %s43
      %s45 = sshll.u32 [#allocation7], 4
      %s46 = int_to_ptr.vmem [resolvable:$true] %s45
      %48 = dma.hbm_to_vmem [thread:$0]  %s44, 32, %s46, [#allocation6]
    $region13: #{tpu_custom_call.1} parent=1 // pred_fallthru
      _
    // Predicated region
    $region14: #{tpu_custom_call.1} parent=1 // pred_check
      _
    $region15: #{tpu_custom_call.1} parent=1 // pred_check_branch
      %50 = sbr.rel (0) target = $region17
    $region16: #{tpu_custom_call.1} parent=1 // pred_region
      %52 = vsyncadd [#allocation9], 0
      %s53 = sshll.u32 %s3, 4
      %s54 = int_to_ptr.hbm [resolvable:$true] %s53
      %s55 = sshll.u32 [#allocation8], 4
      %s56 = int_to_ptr.vmem [resolvable:$true] %s55
      %61 = dma.hbm_to_vmem [thread:$0]  %s54, 4096, %s56, [#allocation9], 128, 128, 8
    $region17: #{tpu_custom_call.1} parent=1 // pred_fallthru
      _
    // Predicated region
    $region18: #{tpu_custom_call.1} parent=1 // pred_check
      _
    $region19: #{tpu_custom_call.1} parent=1 // pred_check_branch
      %63 = sbr.rel (0) target = $region21
    $region20: #{tpu_custom_call.1} parent=1 // pred_region
      _
    $region21: #{tpu_custom_call.1} parent=1 // pred_fallthru
      _
    // Predicated region
    $region22: #{tpu_custom_call.1} parent=1 // pred_check
      _
    $region23: #{tpu_custom_call.1} parent=1 // pred_check_branch
      %65 = sbr.rel (0) target = $region25
    $region24: #{tpu_custom_call.1} parent=1 // pred_region
      %67 = dma.done [#allocation3], 256
    $region25: #{tpu_custom_call.1} parent=1 // pred_fallthru
      _
    // Predicated region
    $region26: #{tpu_custom_call.1} parent=1 // pred_check
      _
    $region27: #{tpu_custom_call.1} parent=1 // pred_check_branch
      %69 = sbr.rel (0) target = $region29
    $region28: #{tpu_custom_call.1} parent=1 // pred_region
      %71 = dma.done [#allocation6], 8192
    $region29: #{tpu_custom_call.1} parent=1 // pred_fallthru
      _
    // Predicated region
    $region30: #{tpu_custom_call.1} parent=1 // pred_check
      _
    $region31: #{tpu_custom_call.1} parent=1 // pred_check_branch
      %73 = sbr.rel (0) target = $region33
    $region32: #{tpu_custom_call.1} parent=1 // pred_region
      %75 = dma.done [#allocation6], 32
    $region33: #{tpu_custom_call.1} parent=1 // pred_fallthru
      _
    // Predicated region
    $region34: #{tpu_custom_call.1} parent=1 // pred_check
      _
    $region35: #{tpu_custom_call.1} parent=1 // pred_check_branch
      %77 = sbr.rel (0) target = $region37
    $region36: #{tpu_custom_call.1} parent=1 // pred_region
      %79 = dma.done [#allocation9], 4096
    $region37: #{tpu_custom_call.1} parent=1 // pred_fallthru
      _
    %v80 = vld [vmem:[#allocation2] sm:$0xff]
    %v81 = vld [vmem:[#allocation2 + $0x8] sm:$0xff]
    %v82 = vld [vmem:[#allocation5] sm:$0xff]
    %v83 = vld [vmem:[#allocation5 + $0x8] sm:$0xff]
    %v84 = vld [vmem:[#allocation5 + $0x10] sm:$0xff]
    %v85 = vld [vmem:[#allocation5 + $0x18] sm:$0xff]
    %v86 = vld [vmem:[#allocation5 + $0x20] sm:$0xff]
    %v87 = vld [vmem:[#allocation5 + $0x28] sm:$0xff]
    %v88 = vld [vmem:[#allocation5 + $0x30] sm:$0xff]
    %v89 = vld [vmem:[#allocation5 + $0x38] sm:$0xff]
    %v90 = vld [vmem:[#allocation5 + $0x40] sm:$0xff]
    %v91 = vld [vmem:[#allocation5 + $0x48] sm:$0xff]
    %v92 = vld [vmem:[#allocation5 + $0x50] sm:$0xff]
    %v93 = vld [vmem:[#allocation5 + $0x58] sm:$0xff]
    %v94 = vld [vmem:[#allocation5 + $0x60] sm:$0xff]
    %v95 = vld [vmem:[#allocation5 + $0x68] sm:$0xff]
    %v96 = vld [vmem:[#allocation5 + $0x70] sm:$0xff]
    %v97 = vld [vmem:[#allocation5 + $0x78] sm:$0xff]
    %v98 = vld [vmem:[#allocation5 + $0x80] sm:$0xff]
    %v99 = vld [vmem:[#allocation5 + $0x88] sm:$0xff]
    %v100 = vld [vmem:[#allocation5 + $0x90] sm:$0xff]
    %v101 = vld [vmem:[#allocation5 + $0x98] sm:$0xff]
    %v102 = vld [vmem:[#allocation5 + $0xa0] sm:$0xff]
    %v103 = vld [vmem:[#allocation5 + $0xa8] sm:$0xff]
    %v104 = vld [vmem:[#allocation5 + $0xb0] sm:$0xff]
    %v105 = vld [vmem:[#allocation5 + $0xb8] sm:$0xff]
    %v106 = vld [vmem:[#allocation5 + $0xc0] sm:$0xff]
    %v107 = vld [vmem:[#allocation5 + $0xc8] sm:$0xff]
    %v108 = vld [vmem:[#allocation5 + $0xd0] sm:$0xff]
    %v109 = vld [vmem:[#allocation5 + $0xd8] sm:$0xff]
    %v110 = vld [vmem:[#allocation5 + $0xe0] sm:$0xff]
    %v111 = vld [vmem:[#allocation5 + $0xe8] sm:$0xff]
    %v112 = vld [vmem:[#allocation5 + $0xf0] sm:$0xff]
    %v113 = vld [vmem:[#allocation5 + $0xf8] sm:$0xff]
    %v114 = vld [vmem:[#allocation5 + $0x100] sm:$0xff]
    %v115 = vld [vmem:[#allocation5 + $0x108] sm:$0xff]
    %v116 = vld [vmem:[#allocation5 + $0x110] sm:$0xff]
    %v117 = vld [vmem:[#allocation5 + $0x118] sm:$0xff]
    %v118 = vld [vmem:[#allocation5 + $0x120] sm:$0xff]
    %v119 = vld [vmem:[#allocation5 + $0x128] sm:$0xff]
    %v120 = vld [vmem:[#allocation5 + $0x130] sm:$0xff]
    %v121 = vld [vmem:[#allocation5 + $0x138] sm:$0xff]
    %v122 = vld [vmem:[#allocation5 + $0x140] sm:$0xff]
    %v123 = vld [vmem:[#allocation5 + $0x148] sm:$0xff]
    %v124 = vld [vmem:[#allocation5 + $0x150] sm:$0xff]
    %v125 = vld [vmem:[#allocation5 + $0x158] sm:$0xff]
    %v126 = vld [vmem:[#allocation5 + $0x160] sm:$0xff]
    %v127 = vld [vmem:[#allocation5 + $0x168] sm:$0xff]
    %v128 = vld [vmem:[#allocation5 + $0x170] sm:$0xff]
    %v129 = vld [vmem:[#allocation5 + $0x178] sm:$0xff]
    %v130 = vld [vmem:[#allocation5 + $0x180] sm:$0xff]
    %v131 = vld [vmem:[#allocation5 + $0x188] sm:$0xff]
    %v132 = vld [vmem:[#allocation5 + $0x190] sm:$0xff]
    %v133 = vld [vmem:[#allocation5 + $0x198] sm:$0xff]
    %v134 = vld [vmem:[#allocation5 + $0x1a0] sm:$0xff]
    %v135 = vld [vmem:[#allocation5 + $0x1a8] sm:$0xff]
    %v136 = vld [vmem:[#allocation5 + $0x1b0] sm:$0xff]
    %v137 = vld [vmem:[#allocation5 + $0x1b8] sm:$0xff]
    %v138 = vld [vmem:[#allocation5 + $0x1c0] sm:$0xff]
    %v139 = vld [vmem:[#allocation5 + $0x1c8] sm:$0xff]
    %v140 = vld [vmem:[#allocation5 + $0x1d0] sm:$0xff]
    %v141 = vld [vmem:[#allocation5 + $0x1d8] sm:$0xff]
    %v142 = vld [vmem:[#allocation5 + $0x1e0] sm:$0xff]
    %v143 = vld [vmem:[#allocation5 + $0x1e8] sm:$0xff]
    %v144 = vld [vmem:[#allocation5 + $0x1f0] sm:$0xff]
    %v145 = vld [vmem:[#allocation5 + $0x1f8] sm:$0xff]
    %v146 = vld [vmem:[#allocation7] sm:$0x3]
    %v148 = vperm.slane %v146, 0
    %v149 = vperm.slane %v146, 1
    %152 = vmatpush.msra.mxu0 %v112
    %153 = vmatpush.msra.mxu0 %v110
    %154 = vmatpush.msra.mxu0 %v108
    %155 = vmatpush.msra.mxu0 %v106
    %156 = vmatpush.msra.mxu0 %v104
    %157 = vmatpush.msra.mxu0 %v102
    %158 = vmatpush.msra.mxu0 %v100
    %159 = vmatpush.msra.mxu0 %v98
    %160 = vmatpush.msra.mxu0 %v96
    %161 = vmatpush.msra.mxu0 %v94
    %162 = vmatpush.msra.mxu0 %v92
    %163 = vmatpush.msra.mxu0 %v90
    %164 = vmatpush.msra.mxu0 %v88
    %165 = vmatpush.msra.mxu0 %v86
    %166 = vmatpush.msra.mxu0 %v84
    %167 = vmatpush.msra.mxu0 %v82
    %168 = vmatmul.f32.gmra.mxu0 %v80
    %v169 = vpop.f32.mrf.mxu0
    %v170 = vadd.f32 %v148, %v169
    %171 = vdwg.mxu0
    %172 = vmatpush.msra.mxu0 %v144
    %173 = vmatpush.msra.mxu0 %v142
    %174 = vmatpush.msra.mxu0 %v140
    %175 = vmatpush.msra.mxu0 %v138
    %176 = vmatpush.msra.mxu0 %v136
    %177 = vmatpush.msra.mxu0 %v134
    %178 = vmatpush.msra.mxu0 %v132
    %179 = vmatpush.msra.mxu0 %v130
    %180 = vmatpush.msra.mxu0 %v128
    %181 = vmatpush.msra.mxu0 %v126
    %182 = vmatpush.msra.mxu0 %v124
    %183 = vmatpush.msra.mxu0 %v122
    %184 = vmatpush.msra.mxu0 %v120
    %185 = vmatpush.msra.mxu0 %v118
    %186 = vmatpush.msra.mxu0 %v116
    %187 = vmatpush.msra.mxu0 %v114
    %188 = vmatmul.f32.gmra.mxu0 %v81
    %v189 = vpop.f32.mrf.mxu0
    %v190 = vadd.f32 %v170, %v189
    %191 = vdwg.mxu0
    %192 = vmatpush.msra.mxu0 %v113
    %193 = vmatpush.msra.mxu0 %v111
    %194 = vmatpush.msra.mxu0 %v109
    %195 = vmatpush.msra.mxu0 %v107
    %196 = vmatpush.msra.mxu0 %v105
    %197 = vmatpush.msra.mxu0 %v103
    %198 = vmatpush.msra.mxu0 %v101
    %199 = vmatpush.msra.mxu0 %v99
    %200 = vmatpush.msra.mxu0 %v97
    %201 = vmatpush.msra.mxu0 %v95
    %202 = vmatpush.msra.mxu0 %v93
    %203 = vmatpush.msra.mxu0 %v91
    %204 = vmatpush.msra.mxu0 %v89
    %205 = vmatpush.msra.mxu0 %v87
    %206 = vmatpush.msra.mxu0 %v85
    %207 = vmatpush.msra.mxu0 %v83
    %208 = vmatmul.f32.gmra.mxu0 %v80
    %v209 = vpop.f32.mrf.mxu0
    %v210 = vadd.f32 %v149, %v209
    %211 = vdwg.mxu0
    %212 = vmatpush.msra.mxu0 %v145
    %213 = vmatpush.msra.mxu0 %v143
    %214 = vmatpush.msra.mxu0 %v141
    %215 = vmatpush.msra.mxu0 %v139
    %216 = vmatpush.msra.mxu0 %v137
    %217 = vmatpush.msra.mxu0 %v135
    %218 = vmatpush.msra.mxu0 %v133
    %219 = vmatpush.msra.mxu0 %v131
    %220 = vmatpush.msra.mxu0 %v129
    %221 = vmatpush.msra.mxu0 %v127
    %222 = vmatpush.msra.mxu0 %v125
    %223 = vmatpush.msra.mxu0 %v123
    %224 = vmatpush.msra.mxu0 %v121
    %225 = vmatpush.msra.mxu0 %v119
    %226 = vmatpush.msra.mxu0 %v117
    %227 = vmatpush.msra.mxu0 %v115
    %228 = vmatmul.f32.gmra.mxu0 %v81
    %v229 = vpop.f32.mrf.mxu0
    %v230 = vadd.f32 %v210, %v229
    %231 = vdwg.mxu0
    %v232 = vtanh.pop %v190
    %v233 = vtanh.pop %v230
    %v234 = vld [vmem:[#allocation8] sm:$0xff]
    %v235 = vld [vmem:[#allocation8 + $0x8] sm:$0xff]
    %v236 = vld [vmem:[#allocation8 + $0x10] sm:$0xff]
    %v237 = vld [vmem:[#allocation8 + $0x18] sm:$0xff]
    %v238 = vld [vmem:[#allocation8 + $0x20] sm:$0xff]
    %v239 = vld [vmem:[#allocation8 + $0x28] sm:$0xff]
    %v240 = vld [vmem:[#allocation8 + $0x30] sm:$0xff]
    %v241 = vld [vmem:[#allocation8 + $0x38] sm:$0xff]
    %v242 = vld [vmem:[#allocation8 + $0x40] sm:$0xff]
    %v243 = vld [vmem:[#allocation8 + $0x48] sm:$0xff]
    %v244 = vld [vmem:[#allocation8 + $0x50] sm:$0xff]
    %v245 = vld [vmem:[#allocation8 + $0x58] sm:$0xff]
    %v246 = vld [vmem:[#allocation8 + $0x60] sm:$0xff]
    %v247 = vld [vmem:[#allocation8 + $0x68] sm:$0xff]
    %v248 = vld [vmem:[#allocation8 + $0x70] sm:$0xff]
    %v249 = vld [vmem:[#allocation8 + $0x78] sm:$0xff]
    %v250 = vld [vmem:[#allocation8 + $0x80] sm:$0xff]
    %v251 = vld [vmem:[#allocation8 + $0x88] sm:$0xff]
    %v252 = vld [vmem:[#allocation8 + $0x90] sm:$0xff]
    %v253 = vld [vmem:[#allocation8 + $0x98] sm:$0xff]
    %v254 = vld [vmem:[#allocation8 + $0xa0] sm:$0xff]
    %v255 = vld [vmem:[#allocation8 + $0xa8] sm:$0xff]
    %v256 = vld [vmem:[#allocation8 + $0xb0] sm:$0xff]
    %v257 = vld [vmem:[#allocation8 + $0xb8] sm:$0xff]
    %v258 = vld [vmem:[#allocation8 + $0xc0] sm:$0xff]
    %v259 = vld [vmem:[#allocation8 + $0xc8] sm:$0xff]
    %v260 = vld [vmem:[#allocation8 + $0xd0] sm:$0xff]
    %v261 = vld [vmem:[#allocation8 + $0xd8] sm:$0xff]
    %v262 = vld [vmem:[#allocation8 + $0xe0] sm:$0xff]
    %v263 = vld [vmem:[#allocation8 + $0xe8] sm:$0xff]
    %v264 = vld [vmem:[#allocation8 + $0xf0] sm:$0xff]
    %v265 = vld [vmem:[#allocation8 + $0xf8] sm:$0xff]
    %v266 = vld [vmem:[%s4] sm:$0x1]
    %v268 = vperm.slane %v266, 0
    %270 = vmatpush.msra.mxu0 %v249
    %271 = vmatpush.msra.mxu0 %v248
    %272 = vmatpush.msra.mxu0 %v247
    %273 = vmatpush.msra.mxu0 %v246
    %274 = vmatpush.msra.mxu0 %v245
    %275 = vmatpush.msra.mxu0 %v244
    %276 = vmatpush.msra.mxu0 %v243
    %277 = vmatpush.msra.mxu0 %v242
    %278 = vmatpush.msra.mxu0 %v241
    %279 = vmatpush.msra.mxu0 %v240
    %280 = vmatpush.msra.mxu0 %v239
    %281 = vmatpush.msra.mxu0 %v238
    %282 = vmatpush.msra.mxu0 %v237
    %283 = vmatpush.msra.mxu0 %v236
    %284 = vmatpush.msra.mxu0 %v235
    %285 = vmatpush.msra.mxu0 %v234
    %286 = vmatmul.f32.gmra.mxu0 %v232
    %v287 = vpop.f32.mrf.mxu0
    %v288 = vadd.f32 %v268, %v287
    %289 = vdwg.mxu0
    %290 = vmatpush.msra.mxu0 %v265
    %291 = vmatpush.msra.mxu0 %v264
    %292 = vmatpush.msra.mxu0 %v263
    %293 = vmatpush.msra.mxu0 %v262
    %294 = vmatpush.msra.mxu0 %v261
    %295 = vmatpush.msra.mxu0 %v260
    %296 = vmatpush.msra.mxu0 %v259
    %297 = vmatpush.msra.mxu0 %v258
    %298 = vmatpush.msra.mxu0 %v257
    %299 = vmatpush.msra.mxu0 %v256
    %300 = vmatpush.msra.mxu0 %v255
    %301 = vmatpush.msra.mxu0 %v254
    %302 = vmatpush.msra.mxu0 %v253
    %303 = vmatpush.msra.mxu0 %v252
    %304 = vmatpush.msra.mxu0 %v251
    %305 = vmatpush.msra.mxu0 %v250
    %306 = vmatmul.f32.gmra.mxu0 %v233
    %v307 = vpop.f32.mrf.mxu0
    %v308 = vadd.f32 %v288, %v307
    %309 = vdwg.mxu0
    %310 = vmax.xlane.f32.xlu0 %v308
    %v311 = vpop.xlane.xlu0 %310
    %v312 = vsub.f32 %v308, %v311
    %v313 = vmul.f32 %v312, 1.442695
    %v314 = vpow.pop %v313
    %315 = vadd.xlane.f32.xlu0 %v314
    %v316 = vpop.xlane.xlu0 %315
    %v317 = vlog2.pop %v316
    %v318 = vmul.f32 %v317, 0.6931472
    %v319 = vsub.f32 %v312, %v318
    %vm320 = vcmask 56320
    %321 = vst.msk [vmem:[#allocation10] sm:$0xff] %vm320, %v319
    // Predicated region
    $region38: #{tpu_custom_call.1} parent=1 // pred_check
      _
    $region39: #{tpu_custom_call.1} parent=1 // pred_check_branch
      %323 = sbr.rel (0) target = $region41
    $region40: #{tpu_custom_call.1} parent=1 // pred_region
      %325 = vsyncadd [#allocation4], 0
      %s327 = sshll.u32 [#allocation10], 4
      %s328 = int_to_ptr.vmem [resolvable:$true] %s327
      %s329 = sshll.u32 %s5, 4
      %s330 = int_to_ptr.hbm [resolvable:$true] %s329
      %332 = dma.vmem_to_hbm [thread:$0]  %s328, 128, %s330, [#allocation4]
    $region41: #{tpu_custom_call.1} parent=1 // pred_fallthru
      _
    // Predicated region
    $region42: #{tpu_custom_call.1} parent=1 // pred_check
      _
    $region43: #{tpu_custom_call.1} parent=1 // pred_check_branch
      %334 = sbr.rel (0) target = $region45
    $region44: #{tpu_custom_call.1} parent=1 // pred_region
      %336 = dma.done [#allocation4], 128
    $region45: #{tpu_custom_call.1} parent=1 // pred_fallthru
      _
    %337 = vsyncpa [#allocation3], 1
    %338 = vsyncpa [#allocation6], 1
    %339 = vsyncpa [#allocation9], 1
    %340 = vsyncpa [#allocation4], 1

</llo_original>
